<compile_context>
chip_gen: v7x
topology: tpu7x:2x2x1
jax: 0.10.0
libtpu: 0.0.40
codegen_flags: <defaults>
</compile_context>

<pallas_src>
import jax
import jax.numpy as jnp
from jax.experimental import pallas as pl
from jax.experimental.pallas import tpu as pltpu

_LANE = 128


def _round_up(n, m):
    return ((n + m - 1) // m) * m


def _safe_recip(d):
    # Guard degenerate MFs (b == a or c == b) so the precomputed reciprocal
    # never injects inf/nan into the kernel.  Well-formed params are exact.
    nonzero = d != 0
    return jnp.where(nonzero, 1.0 / jnp.where(nonzero, d, 1.0), 0.0)


def _antecedent_kernel(x_ref, a_ref, iba_ref, c_ref, icb_ref, out_ref):
    # x_ref           : (F, 1, TB)  feature values, batch on the lane axis
    # a_ref, c_ref    : (F, S, 1)   left / right feet of the triangular MFs
    # iba_ref, icb_ref: (F, S, 1)   precomputed 1/(b-a), 1/(c-b)
    # out_ref         : (F, S, TB)  membership degrees
    # Hoist the sublane broadcast of x across the S axis once (instead of
    # re-materialising it inside both binary ops).
    x = jnp.broadcast_to(x_ref[...], out_ref.shape)       # (F, S, TB)
    left = (x - a_ref[...]) * iba_ref[...]                 # (F, S, TB)
    right = (c_ref[...] - x) * icb_ref[...]                # (F, S, TB)
    out_ref[...] = jnp.maximum(jnp.minimum(left, right), 0.0).astype(out_ref.dtype)


def _choose_batch_tile(bp, n_feat, n_sets,
                       target_out_bytes=4 << 20,      # 2-8 MiB/step per tile sweep
                       max_working_set=12 << 20):     # 2x-buffered, safe on v5e/v7x
    s_pad = _round_up(n_sets, 8)
    out_bytes_per_lane = 4 * n_feat * n_sets
    # Per-lane VMEM footprint of one buffer: x block (sublane dim 1 pads to 8)
    # plus the output block (sublane dim S pads to multiple of 8).
    vmem_bytes_per_lane = 4 * n_feat * (8 + s_pad)
    tb_target = max(target_out_bytes // max(out_bytes_per_lane, 1), _LANE)
    tb_vmem = max(max_working_set // (2 * vmem_bytes_per_lane), _LANE)
    tb = min(int(tb_target), int(tb_vmem), bp)
    tb = max(_LANE, (tb // _LANE) * _LANE)
    # v7x has 2 TensorCores: prefer >= 2 steps on the "parallel" axis when the
    # padded batch allows it (harmless on v5e/v6e).
    if bp >= 2 * _LANE:
        half = max(_LANE, _round_up(bp // 2, _LANE))
        tb = min(tb, half)
    return tb


def _fallback_stacked(x, a, iba, c, icb):
    # Fused pure-jnp path for small batches (same reciprocal semantics as the
    # kernel, so both paths agree bit-for-bit on degenerate MFs).
    xi = x[:, None, :]                                     # (F, 1, B)
    left = (xi - a[..., None]) * iba[..., None]            # (F, S, B)
    right = (c[..., None] - xi) * icb[..., None]
    return jnp.maximum(jnp.minimum(left, right), 0.0)


def input_layer_forward_stacked(x, a, b, c, *,
                                out_dtype=jnp.float32,
                                min_pallas_batch=512,
                                force_pallas=False):
    """NEFCLASS InputLayer forward, set-major layout.

    x       : (n_feat, batch) float32   -- x[i] is the i-th feature's values
    a, b, c : (n_feat, n_sets) float32  -- triangular MF params per feature

    Returns a single (n_feat, n_sets, batch) array of membership degrees
    (antecedents[i](x[i]) transposed).  This is the recommended API: it avoids
    the extra full-HBM transpose pass and the per-feature unstack slices.
    """
    n_feat, batch = x.shape
    n_sets = a.shape[1]

    x = x.astype(jnp.float32)
    a = a.astype(jnp.float32)
    b = b.astype(jnp.float32)
    c = c.astype(jnp.float32)
    iba = _safe_recip(b - a)
    icb = _safe_recip(c - b)

    if batch < min_pallas_batch and not force_pallas:
        # Padding-to-128, launch overhead and slicing dominate at this size.
        return _fallback_stacked(x, a, iba, c, icb).astype(out_dtype)

    # Lane-dense batch tiling: pad batch to a multiple of 128 lanes, then pick
    # the tile size from a byte budget instead of a fixed cap.
    bp = _round_up(batch, _LANE)
    tb = _choose_batch_tile(bp, n_feat, n_sets)
    bp = _round_up(bp, tb)
    n_tiles = bp // tb

    x3 = jnp.pad(x, ((0, 0), (0, bp - batch)))[:, None, :]    # (F, 1, Bp)
    a3 = a.reshape(n_feat, n_sets, 1)
    c3 = c.reshape(n_feat, n_sets, 1)
    iba3 = iba.reshape(n_feat, n_sets, 1)
    icb3 = icb.reshape(n_feat, n_sets, 1)

    # Constant index_map across the grid -> parameter blocks stay VMEM-resident.
    param_spec = pl.BlockSpec((n_feat, n_sets, 1), lambda j: (0, 0, 0))

    # Explicit VMEM budget + cost estimate (advisory for XLA scheduling).
    s_pad = _round_up(n_sets, 8)
    out_itemsize = jnp.dtype(out_dtype).itemsize
    working_set = 2 * (n_feat * 8 * tb * 4 + n_feat * s_pad * tb * out_itemsize) \
        + 2 * 4 * (n_feat * s_pad * _LANE * 4)
    vmem_limit = int(min(max(2 * working_set, 16 << 20), 32 << 20))
    cost = pl.CostEstimate(
        flops=6 * n_feat * n_sets * bp,
        transcendentals=0,
        bytes_accessed=4 * (n_feat * bp + 4 * n_feat * n_sets)
        + out_itemsize * n_feat * n_sets * bp,
    )

    out = pl.pallas_call(
        _antecedent_kernel,
        out_shape=jax.ShapeDtypeStruct((n_feat, n_sets, bp), out_dtype),
        grid=(n_tiles,),                       # batch tiles only
        in_specs=[
            pl.BlockSpec((n_feat, 1, tb), lambda j: (0, 0, j)),
            param_spec,   # a
            param_spec,   # 1/(b-a)
            param_spec,   # c
            param_spec,   # 1/(c-b)
        ],
        out_specs=pl.BlockSpec((n_feat, n_sets, tb), lambda j: (0, 0, j)),
        compiler_params=pltpu.CompilerParams(
            dimension_semantics=("parallel",),
            vmem_limit_bytes=vmem_limit,
        ),
        cost_estimate=cost,
    )(x3, a3, iba3, c3, icb3)

    return out[:, :, :batch]                   # (F, S, batch), set-major


def input_layer_forward(x, a, b, c, **kwargs):
    """PyTorch-compatible wrapper: list of n_feat arrays, each (batch, n_sets).

    Note: this does one extra transpose over the full result; downstream
    NEFCLASS layers should prefer `input_layer_forward_stacked` when they can
    consume the set-major (F, S, batch) layout directly.
    """
    n_feat = x.shape[0]
    out = input_layer_forward_stacked(x, a, b, c, **kwargs)   # (F, S, B)
    out_bt = jnp.transpose(out, (0, 2, 1))                    # (F, B, S)
    return [out_bt[i] for i in range(n_feat)]


def _reference_stacked(x, a, b, c):
    # Pure-JAX reference with literal divides (as the PyTorch Antecedent would
    # compute), set-major (F, S, batch).
    xi = x[:, None, :]
    left = (xi - a[..., None]) / (b - a)[..., None]
    right = (c[..., None] - xi) / (c - b)[..., None]
    return jnp.maximum(jnp.minimum(left, right), 0.0)


if __name__ == "__main__":
    n_feat, n_sets = 4, 5
    batch_small, batch_large = 16, 1024   # fallback path / Pallas path

    # Deterministic parameter init (as the module's __init__ would build its
    # Antecedents): n_sets evenly spaced triangular MFs on [0, 1] per feature,
    # with a small per-feature offset so the features differ.
    centers = jnp.linspace(0.0, 1.0, n_sets)                    # (n_sets,)
    width = 1.0 / (n_sets - 1)
    feat_shift = 0.01 * jnp.arange(n_feat, dtype=jnp.float32)   # (n_feat,)
    b_param = centers[None, :] + feat_shift[:, None]            # (n_feat, n_sets)
    a_param = b_param - width
    c_param = b_param + width

    key = jax.random.PRNGKey(0)
    k_small, k_large = jax.random.split(key)
    x_small = jax.random.uniform(k_small, (n_feat, batch_small), dtype=jnp.float32)
    x_large = jax.random.uniform(k_large, (n_feat, batch_large), dtype=jnp.float32)

    # Pallas path (batch >= min_pallas_batch): stacked set-major output.
    out_large = jax.block_until_ready(
        input_layer_forward_stacked(x_large, a_param, b_param, c_param))
    assert out_large.shape == (n_feat, n_sets, batch_large)
    ref_large = _reference_stacked(x_large, a_param, b_param, c_param)
    assert jnp.allclose(out_large, ref_large, atol=1e-5), "pallas path mismatch"

    # Small-batch fallback + PyTorch-style list API.
    outs_small = input_layer_forward(x_small, a_param, b_param, c_param)
    outs_small = [jax.block_until_ready(o) for o in outs_small]
    ref_small = jnp.transpose(
        _reference_stacked(x_small, a_param, b_param, c_param), (0, 2, 1))
    for i, o in enumerate(outs_small):
        assert o.shape == (batch_small, n_sets)
        assert jnp.allclose(o, ref_small[i], atol=1e-5), "fallback path mismatch"

    print("KERNEL_OK")
</pallas_src>

<mosaic_0001>
module attributes {stable_mosaic.version = 11 : i64} {
  func.func @_antecedent_kernel(%arg0: i32, %arg1: memref<4x1x512xf32, #tpu.memory_space<vmem>>, %arg2: memref<4x5x1xf32, #tpu.memory_space<vmem>>, %arg3: memref<4x5x1xf32, #tpu.memory_space<vmem>>, %arg4: memref<4x5x1xf32, #tpu.memory_space<vmem>>, %arg5: memref<4x5x1xf32, #tpu.memory_space<vmem>>, %arg6: memref<4x5x512xf32, #tpu.memory_space<vmem>>) attributes {dimension_semantics = [#tpu.dimension_semantics<parallel>], iteration_bounds = array<i64: 2>, scalar_prefetch = 0 : i64, scratch_operands = 0 : i64, tpu.core_type = #tpu.core_type<tc>, window_params = [{transform_indices = @transform_0, window_bounds = array<i64: 4, 1, 512>}, {pipeline_mode = #tpu.pipeline_mode<synchronous>, transform_indices = @transform_1, window_bounds = array<i64: 4, 5, 1>}, {pipeline_mode = #tpu.pipeline_mode<synchronous>, transform_indices = @transform_2, window_bounds = array<i64: 4, 5, 1>}, {pipeline_mode = #tpu.pipeline_mode<synchronous>, transform_indices = @transform_3, window_bounds = array<i64: 4, 5, 1>}, {pipeline_mode = #tpu.pipeline_mode<synchronous>, transform_indices = @transform_4, window_bounds = array<i64: 4, 5, 1>}, {transform_indices = @transform_5, window_bounds = array<i64: 4, 5, 512>}]} {
    %c0 = arith.constant 0 : index
    %c0_0 = arith.constant 0 : index
    %c0_1 = arith.constant 0 : index
    %0 = vector.load %arg1[%c0, %c0_0, %c0_1] : memref<4x1x512xf32, #tpu.memory_space<vmem>>, vector<4x1x512xf32>
    %1 = vector.shape_cast %0 : vector<4x1x512xf32> to vector<4x1x512xf32>
    %2 = vector.broadcast %1 : vector<4x1x512xf32> to vector<4x5x512xf32>
    %c0_2 = arith.constant 0 : index
    %c0_3 = arith.constant 0 : index
    %c0_4 = arith.constant 0 : index
    %3 = vector.load %arg2[%c0_2, %c0_3, %c0_4] : memref<4x5x1xf32, #tpu.memory_space<vmem>>, vector<4x5x1xf32>
    %4 = vector.broadcast %3 : vector<4x5x1xf32> to vector<4x5x512xf32>
    %5 = arith.subf %2, %4 : vector<4x5x512xf32>
    %c0_5 = arith.constant 0 : index
    %c0_6 = arith.constant 0 : index
    %c0_7 = arith.constant 0 : index
    %6 = vector.load %arg3[%c0_5, %c0_6, %c0_7] : memref<4x5x1xf32, #tpu.memory_space<vmem>>, vector<4x5x1xf32>
    %7 = vector.broadcast %6 : vector<4x5x1xf32> to vector<4x5x512xf32>
    %8 = arith.mulf %5, %7 : vector<4x5x512xf32>
    %c0_8 = arith.constant 0 : index
    %c0_9 = arith.constant 0 : index
    %c0_10 = arith.constant 0 : index
    %9 = vector.load %arg4[%c0_8, %c0_9, %c0_10] : memref<4x5x1xf32, #tpu.memory_space<vmem>>, vector<4x5x1xf32>
    %10 = vector.broadcast %9 : vector<4x5x1xf32> to vector<4x5x512xf32>
    %11 = arith.subf %10, %2 : vector<4x5x512xf32>
    %c0_11 = arith.constant 0 : index
    %c0_12 = arith.constant 0 : index
    %c0_13 = arith.constant 0 : index
    %12 = vector.load %arg5[%c0_11, %c0_12, %c0_13] : memref<4x5x1xf32, #tpu.memory_space<vmem>>, vector<4x5x1xf32>
    %13 = vector.broadcast %12 : vector<4x5x1xf32> to vector<4x5x512xf32>
    %14 = arith.mulf %11, %13 : vector<4x5x512xf32>
    %15 = arith.minimumf %8, %14 : vector<4x5x512xf32>
    %cst = arith.constant 0.000000e+00 : f32
    %16 = vector.broadcast %cst : f32 to vector<4x5x512xf32>
    %17 = arith.maximumf %15, %16 : vector<4x5x512xf32>
    %c0_14 = arith.constant 0 : index
    %c0_15 = arith.constant 0 : index
    %c0_16 = arith.constant 0 : index
    %18 = vector.load %arg6[%c0_14, %c0_15, %c0_16] : memref<4x5x512xf32, #tpu.memory_space<vmem>>, vector<4x5x512xf32>
    tpu.vector_store %arg6[%c0_14, %c0_15, %c0_16], %17 {strides = array<i32>} : memref<4x5x512xf32, #tpu.memory_space<vmem>>, vector<4x5x512xf32>,
    return
  }
  func.func @transform_0(%arg0: i32) -> (i32, i32, i32) {
    %c0_i32 = arith.constant 0 : i32
    %c0_i32_0 = arith.constant 0 : i32
    %c0_i32_1 = arith.constant 0 : i32
    return %c0_i32, %c0_i32_0, %arg0 : i32, i32, i32
  }
  func.func @transform_1(%arg0: i32) -> (i32, i32, i32) {
    %c0_i32 = arith.constant 0 : i32
    %c0_i32_0 = arith.constant 0 : i32
    %c0_i32_1 = arith.constant 0 : i32
    %c0_i32_2 = arith.constant 0 : i32
    return %c0_i32, %c0_i32_0, %c0_i32_1 : i32, i32, i32
  }
  func.func @transform_2(%arg0: i32) -> (i32, i32, i32) {
    %c0_i32 = arith.constant 0 : i32
    %c0_i32_0 = arith.constant 0 : i32
    %c0_i32_1 = arith.constant 0 : i32
    %c0_i32_2 = arith.constant 0 : i32
    return %c0_i32, %c0_i32_0, %c0_i32_1 : i32, i32, i32
  }
  func.func @transform_3(%arg0: i32) -> (i32, i32, i32) {
    %c0_i32 = arith.constant 0 : i32
    %c0_i32_0 = arith.constant 0 : i32
    %c0_i32_1 = arith.constant 0 : i32
    %c0_i32_2 = arith.constant 0 : i32
    return %c0_i32, %c0_i32_0, %c0_i32_1 : i32, i32, i32
  }
  func.func @transform_4(%arg0: i32) -> (i32, i32, i32) {
    %c0_i32 = arith.constant 0 : i32
    %c0_i32_0 = arith.constant 0 : i32
    %c0_i32_1 = arith.constant 0 : i32
    %c0_i32_2 = arith.constant 0 : i32
    return %c0_i32, %c0_i32_0, %c0_i32_1 : i32, i32, i32
  }
  func.func @transform_5(%arg0: i32) -> (i32, i32, i32) {
    %c0_i32 = arith.constant 0 : i32
    %c0_i32_0 = arith.constant 0 : i32
    %c0_i32_1 = arith.constant 0 : i32
    return %c0_i32, %c0_i32_0, %arg0 : i32, i32, i32
  }
}

</mosaic_0001>

<llo_original>
// kernel: tpu_custom_call.1
$region0: #{tpu_custom_call.1}
  #allocation0 [shape = 'u32[]', space=smem, size = 0x4, offset = 0x4, fixed_abs, tag = 'smem constant byte address 0x4 - core index']
  #allocation1 [shape = 'u32[144,128]{1,0:T(1,128)}', space=vmem, size = 0x12000, scoped, tag = 'internal scratch']
  %s0 = inlined_call_operand.vmem [shape: f32[4,1,1024], index: 0, kind: input, shape index: {}]
  %s1 = inlined_call_operand.vmem [shape: f32[4,5,1], index: 1, kind: input, shape index: {}]
  %s2 = inlined_call_operand.vmem [shape: f32[4,5,1], index: 2, kind: input, shape index: {}]
  %s3 = inlined_call_operand.vmem [shape: f32[4,5,1], index: 3, kind: input, shape index: {}]
  %s4 = inlined_call_operand.vmem [shape: f32[4,5,1], index: 4, kind: input, shape index: {}]
  %s5 = inlined_call_operand.vmem [shape: f32[4,5,1024], index: 5, kind: output, shape index: {}]
  %s6 = sld [smem:[#allocation0]]
  $region113: #{tpu_custom_call.1} parent=0
    _
  %s8 = ssub.s32 1, %s6
  %s9 = scalar_select 0, %s8, %s6
  $region1: #{tpu_custom_call.1} parent=0
    #allocation2 [shape = 'u8[16384]{0}', space=vmem, size = 0x4000, scoped, tag = 'input window, operand 0']
    #allocation3 [shape = 'u8[131072]{0}', space=vmem, size = 0x20000, scoped, tag = 'output window, operand 0']
    loop: start=0, step=1, limit=4
    $region2: #{tpu_custom_call.1} parent=1 // loop_pre_header
      _
    $region3: #{tpu_custom_call.1} parent=1 // loop_header
      %s11 = sphi 0, %s15
      %p12 = scmp.ge.s32.totalorder %s11, 4
      %s21 = sphi 0, %s23
      %s24 = sphi 0, %s21
      %s25 = sphi 0, %s24
      %s41 = sphi 0, %s25
      %s45 = sphi 0, %s45
      %s47 = sphi 0, %s45
      %s48 = sphi 0, %s47
      %s62 = sphi 0, %s48
      %s66 = sphi 0, %s66
      %s68 = sphi 0, %s66
      %s69 = sphi 0, %s68
      %s83 = sphi 0, %s69
      %s87 = sphi 0, %s87
      %s89 = sphi 0, %s87
      %s90 = sphi 0, %s89
      %s104 = sphi 0, %s90
      %s108 = sphi 0, %s108
      %s110 = sphi 0, %s108
      %s111 = sphi 0, %s110
      %s125 = sphi 0, %s111
      %s131 = sphi 0, %s133
      %s134 = sphi 0, %s131
      %s135 = sphi 0, %s134
      %s151 = sphi 0, %s135
    $region4: #{tpu_custom_call.1} parent=1 // loop_header_branch
      %14 = sbr.rel (%p12) target = $region8
    $region5: #{tpu_custom_call.1} parent=1 // loop_body
      %s16 = ssub.s32 %s11, 1
      %s17 = ssub.s32 %s11, 2
      %s18 = sadd.s32 %s11, 1
      %s19 = ssub.s32 %s11, %s18
      %p20 = scmp.eq.s32.totalorder %s19, 0
      %s22 = sadd.s32 %s21, 1
      %s23 = scalar_select %p20, %s21, %s22
      %p26 = pneg %p20
      %p27 = scmp.eq.s32.totalorder %s11, 1
      %p28 = por %p26, %p27
      %p29 = scmp.ne.s32.totalorder %s21, %s24
      %p30 = scmp.eq.s32.totalorder %s11, 0
      %p31 = por %p29, %p30
      %p32 = scmp.ne.s32.totalorder %s21, %s24
      %p33 = scmp.eq.s32.totalorder %s16, 1
      %p34 = por %p32, %p33
      %p35 = scmp.ne.s32.totalorder %s24, %s25
      %p36 = scmp.eq.s32.totalorder %s16, 0
      %p37 = por %p35, %p36
      %p38 = scmp.ne.s32.totalorder %s24, %s25
      %p39 = scmp.eq.s32.totalorder %s17, 1
      %p40 = por %p38, %p39
      %p42 = scmp.ne.s32.totalorder %s25, %s41
      %p43 = scmp.eq.s32.totalorder %s17, 0
      %p44 = por %p42, %p43
      %s46 = sadd.s32 %s45, 1
      %p49 = scmp.eq.s32.totalorder %s11, 1
      %p50 = scmp.ne.s32.totalorder %s45, %s47
      %p51 = scmp.eq.s32.totalorder %s11, 0
      %p52 = por %p50, %p51
      %p53 = scmp.ne.s32.totalorder %s45, %s47
      %p54 = scmp.eq.s32.totalorder %s16, 1
      %p55 = por %p53, %p54
      %p56 = scmp.ne.s32.totalorder %s47, %s48
      %p57 = scmp.eq.s32.totalorder %s16, 0
      %p58 = por %p56, %p57
      %p59 = scmp.ne.s32.totalorder %s47, %s48
      %p60 = scmp.eq.s32.totalorder %s17, 1
      %p61 = por %p59, %p60
      %p63 = scmp.ne.s32.totalorder %s48, %s62
      %p64 = scmp.eq.s32.totalorder %s17, 0
      %p65 = por %p63, %p64
      %s67 = sadd.s32 %s66, 1
      %p70 = scmp.eq.s32.totalorder %s11, 1
      %p71 = scmp.ne.s32.totalorder %s66, %s68
      %p72 = scmp.eq.s32.totalorder %s11, 0
      %p73 = por %p71, %p72
      %p74 = scmp.ne.s32.totalorder %s66, %s68
      %p75 = scmp.eq.s32.totalorder %s16, 1
      %p76 = por %p74, %p75
      %p77 = scmp.ne.s32.totalorder %s68, %s69
      %p78 = scmp.eq.s32.totalorder %s16, 0
      %p79 = por %p77, %p78
      %p80 = scmp.ne.s32.totalorder %s68, %s69
      %p81 = scmp.eq.s32.totalorder %s17, 1
      %p82 = por %p80, %p81
      %p84 = scmp.ne.s32.totalorder %s69, %s83
      %p85 = scmp.eq.s32.totalorder %s17, 0
      %p86 = por %p84, %p85
      %s88 = sadd.s32 %s87, 1
      %p91 = scmp.eq.s32.totalorder %s11, 1
      %p92 = scmp.ne.s32.totalorder %s87, %s89
      %p93 = scmp.eq.s32.totalorder %s11, 0
      %p94 = por %p92, %p93
      %p95 = scmp.ne.s32.totalorder %s87, %s89
      %p96 = scmp.eq.s32.totalorder %s16, 1
      %p97 = por %p95, %p96
      %p98 = scmp.ne.s32.totalorder %s89, %s90
      %p99 = scmp.eq.s32.totalorder %s16, 0
      %p100 = por %p98, %p99
      %p101 = scmp.ne.s32.totalorder %s89, %s90
      %p102 = scmp.eq.s32.totalorder %s17, 1
      %p103 = por %p101, %p102
      %p105 = scmp.ne.s32.totalorder %s90, %s104
      %p106 = scmp.eq.s32.totalorder %s17, 0
      %p107 = por %p105, %p106
      %s109 = sadd.s32 %s108, 1
      %p112 = scmp.eq.s32.totalorder %s11, 1
      %p113 = scmp.ne.s32.totalorder %s108, %s110
      %p114 = scmp.eq.s32.totalorder %s11, 0
      %p115 = por %p113, %p114
      %p116 = scmp.ne.s32.totalorder %s108, %s110
      %p117 = scmp.eq.s32.totalorder %s16, 1
      %p118 = por %p116, %p117
      %p119 = scmp.ne.s32.totalorder %s110, %s111
      %p120 = scmp.eq.s32.totalorder %s16, 0
      %p121 = por %p119, %p120
      %p122 = scmp.ne.s32.totalorder %s110, %s111
      %p123 = scmp.eq.s32.totalorder %s17, 1
      %p124 = por %p122, %p123
      %p126 = scmp.ne.s32.totalorder %s111, %s125
      %p127 = scmp.eq.s32.totalorder %s17, 0
      %p128 = por %p126, %p127
      %s129 = ssub.s32 %s11, %s18
      %p130 = scmp.eq.s32.totalorder %s129, 0
      %s132 = sadd.s32 %s131, 1
      %s133 = scalar_select %p130, %s131, %s132
      %p136 = pneg %p130
      %p137 = scmp.eq.s32.totalorder %s11, 1
      %p138 = por %p136, %p137
      %p139 = scmp.ne.s32.totalorder %s131, %s134
      %p140 = scmp.eq.s32.totalorder %s11, 0
      %p141 = por %p139, %p140
      %p142 = scmp.ne.s32.totalorder %s131, %s134
      %p143 = scmp.eq.s32.totalorder %s16, 1
      %p144 = por %p142, %p143
      %p145 = scmp.ne.s32.totalorder %s134, %s135
      %p146 = scmp.eq.s32.totalorder %s16, 0
      %p147 = por %p145, %p146
      %p148 = scmp.ne.s32.totalorder %s134, %s135
      %p149 = scmp.eq.s32.totalorder %s17, 1
      %p150 = por %p148, %p149
      %p152 = scmp.ne.s32.totalorder %s135, %s151
      %p153 = scmp.eq.s32.totalorder %s17, 0
      %p154 = por %p152, %p153
      %p155 = scmp.le.s32.totalorder 1, %s11
      %p156 = scmp.lt.s32.totalorder %s11, 3
      %p157 = pnand %p155, %p156
      %p158 = pneg %p157
      // Predicated region
      $region9: #{tpu_custom_call.1} parent=5 // pred_check
        _
      $region10: #{tpu_custom_call.1} parent=5 // pred_check_branch
        %160 = sbr.rel (%p157) target = $region12
      $region11: #{tpu_custom_call.1} parent=5 // pred_region
        %s161 = ssub.s32 %s11, 1
        // Predicated region
        $region13: #{tpu_custom_call.1} parent=11 // pred_check
          %p162 = pneg %p58
        $region14: #{tpu_custom_call.1} parent=11 // pred_check_branch
          %164 = sbr.rel (%p162) target = $region16
        $region15: #{tpu_custom_call.1} parent=11 // pred_region
          _
        $region16: #{tpu_custom_call.1} parent=11 // pred_fallthru
          _
        // Predicated region
        $region17: #{tpu_custom_call.1} parent=11 // pred_check
          %p165 = pneg %p79
        $region18: #{tpu_custom_call.1} parent=11 // pred_check_branch
          %167 = sbr.rel (%p165) target = $region20
        $region19: #{tpu_custom_call.1} parent=11 // pred_region
          _
        $region20: #{tpu_custom_call.1} parent=11 // pred_fallthru
          _
        // Predicated region
        $region21: #{tpu_custom_call.1} parent=11 // pred_check
          %p168 = pneg %p100
        $region22: #{tpu_custom_call.1} parent=11 // pred_check_branch
          %170 = sbr.rel (%p168) target = $region24
        $region23: #{tpu_custom_call.1} parent=11 // pred_region
          _
        $region24: #{tpu_custom_call.1} parent=11 // pred_fallthru
          _
        // Predicated region
        $region25: #{tpu_custom_call.1} parent=11 // pred_check
          %p171 = pneg %p121
        $region26: #{tpu_custom_call.1} parent=11 // pred_check_branch
          %173 = sbr.rel (%p171) target = $region28
        $region27: #{tpu_custom_call.1} parent=11 // pred_region
          _
        $region28: #{tpu_custom_call.1} parent=11 // pred_fallthru
          _
      $region12: #{tpu_custom_call.1} parent=5 // pred_fallthru
        _
      %p174 = scmp.lt.s32.totalorder %s11, 2
      // Predicated region
      $region29: #{tpu_custom_call.1} parent=5 // pred_check
        %p175 = pneg %p174
      $region30: #{tpu_custom_call.1} parent=5 // pred_check_branch
        %177 = sbr.rel (%p175) target = $region32
      $region31: #{tpu_custom_call.1} parent=5 // pred_region
        // Predicated region
        $region33: #{tpu_custom_call.1} parent=31 // pred_check
          %p178 = pneg %p31
        $region34: #{tpu_custom_call.1} parent=31 // pred_check_branch
          %180 = sbr.rel (%p178) target = $region36
        $region35: #{tpu_custom_call.1} parent=31 // pred_region
          %s181 = sand.u32 %s21, 1
          %s182 = sand.u32 %s21, 1
          %s183 = smul.addr %s182, 16
          %s184 = scalar_lea.vmem [#allocation2], %s183
          %s185 = smul.u32 4, %s11
          %s186 = scalar_lea.vmem %s0, %s185
          // Predicated region
          $region37: #{tpu_custom_call.1} parent=35 // pred_check
            _
          $region38: #{tpu_custom_call.1} parent=35 // pred_check_branch
            %188 = sbr.rel (0) target = $region40
          $region39: #{tpu_custom_call.1} parent=35 // pred_region
            // Predicated region
            $region41: #{tpu_custom_call.1} parent=39 // pred_check
              _
            $region42: #{tpu_custom_call.1} parent=39 // pred_check_branch
              %190 = sbr.rel target = $region44
            $region43: #{tpu_custom_call.1} parent=39 // pred_region
              // Predicated region
              $region56: #{tpu_custom_call.1} parent=43 // pred_check
                _
              $region57: #{tpu_custom_call.1} parent=43 // pred_check_branch
                %211 = sbr.rel (0) target = $region59
              $region58: #{tpu_custom_call.1} parent=43 // pred_region
                loop: start=0, step=1, limit=1
                $region60: #{tpu_custom_call.1} parent=58 // loop_pre_header
                  _
                $region61: #{tpu_custom_call.1} parent=58 // loop_header
                  %s213 = sphi 0, %s217
                  %p214 = scmp.ge.s32.totalorder %s213, 1
                  %s218 = sphi %s186, %s186
                  %s219 = sphi %s184, %s184
                $region62: #{tpu_custom_call.1} parent=58 // loop_header_branch
                  %216 = sbr.rel (%p214) target = $region66
                $region63: #{tpu_custom_call.1} parent=58 // loop_body
                  _
                $region64: #{tpu_custom_call.1} parent=58 // loop_footer
                  %s217 = sadd.s32 1, %s213
                $region65: #{tpu_custom_call.1} parent=58 // loop_footer_branch
                  %212 = sbr.rel target = $region61
                $region66: #{tpu_custom_call.1} parent=58 // loop_exit
                  _
                loop: start=0, step=1, limit=1
                $region67: #{tpu_custom_call.1} parent=58 // loop_pre_header
                  _
                $region68: #{tpu_custom_call.1} parent=58 // loop_header
                  %s222 = sphi 0, %s226
                  %p223 = scmp.ge.s32.totalorder %s222, 1
                  %s227 = sphi %s186, %s186
                  %s228 = sphi %s184, %s184
                $region69: #{tpu_custom_call.1} parent=58 // loop_header_branch
                  %225 = sbr.rel (%p223) target = $region73
                $region70: #{tpu_custom_call.1} parent=58 // loop_body
                  %v229 = vld [vmem:[%s227] sm:$0xf]
                  %230 = vst [vmem:[%s228] sm:$0xf] %v229
                  %v231 = vld [vmem:[%s227 + $0x8] sm:$0xf]
                  %232 = vst [vmem:[%s228 + $0x4] sm:$0xf] %v231
                  %v233 = vld [vmem:[%s227 + $0x10] sm:$0xf]
                  %234 = vst [vmem:[%s228 + $0x8] sm:$0xf] %v233
                  %v235 = vld [vmem:[%s227 + $0x18] sm:$0xf]
                  %236 = vst [vmem:[%s228 + $0xc] sm:$0xf] %v235
                $region71: #{tpu_custom_call.1} parent=58 // loop_footer
                  %s226 = sadd.s32 1, %s222
                $region72: #{tpu_custom_call.1} parent=58 // loop_footer_branch
                  %221 = sbr.rel target = $region68
                $region73: #{tpu_custom_call.1} parent=58 // loop_exit
                  _
              $region59: #{tpu_custom_call.1} parent=43 // pred_fallthru
                _
            $region44: #{tpu_custom_call.1} parent=39 // pred_fallthru
              _
            // Predicated region
            $region45: #{tpu_custom_call.1} parent=39 // pred_check
              _
            $region46: #{tpu_custom_call.1} parent=39 // pred_check_branch
              %192 = sbr.rel (0) target = $region48
            $region47: #{tpu_custom_call.1} parent=39 // pred_region
              loop: start=0, step=1, limit=1
              $region49: #{tpu_custom_call.1} parent=47 // loop_pre_header
                _
              $region50: #{tpu_custom_call.1} parent=47 // loop_header
                %s195 = sphi 0, %s199
                %p196 = scmp.ge.s32.totalorder %s195, 1
                %s200 = sphi %s186, %s186
                %s201 = sphi %s184, %s184
              $region51: #{tpu_custom_call.1} parent=47 // loop_header_branch
                %198 = sbr.rel (%p196) target = $region55
              $region52: #{tpu_custom_call.1} parent=47 // loop_body
                %v202 = vld [vmem:[%s200] sm:$0xf]
                %203 = vst [vmem:[%s201] sm:$0xf] %v202
                %v204 = vld [vmem:[%s200 + $0x8] sm:$0xf]
                %205 = vst [vmem:[%s201 + $0x4] sm:$0xf] %v204
                %v206 = vld [vmem:[%s200 + $0x10] sm:$0xf]
                %207 = vst [vmem:[%s201 + $0x8] sm:$0xf] %v206
                %v208 = vld [vmem:[%s200 + $0x18] sm:$0xf]
                %209 = vst [vmem:[%s201 + $0xc] sm:$0xf] %v208
              $region53: #{tpu_custom_call.1} parent=47 // loop_footer
                %s199 = sadd.s32 1, %s195
              $region54: #{tpu_custom_call.1} parent=47 // loop_footer_branch
                %194 = sbr.rel target = $region50
              $region55: #{tpu_custom_call.1} parent=47 // loop_exit
                _
            $region48: #{tpu_custom_call.1} parent=39 // pred_fallthru
              _
          $region40: #{tpu_custom_call.1} parent=35 // pred_fallthru
            _
          %237 = vnop
        $region36: #{tpu_custom_call.1} parent=31 // pred_fallthru
          _
      $region32: #{tpu_custom_call.1} parent=5 // pred_fallthru
        _
      %p238 = scmp.le.s32.totalorder 1, %s11
      %p239 = scmp.lt.s32.totalorder %s11, 3
      %p240 = pnand %p238, %p239
      %p241 = pneg %p240
      // Predicated region
      $region74: #{tpu_custom_call.1} parent=5 // pred_check
        _
      $region75: #{tpu_custom_call.1} parent=5 // pred_check_branch
        %243 = sbr.rel (%p240) target = $region77
      $region76: #{tpu_custom_call.1} parent=5 // pred_region
        %s244 = ssub.s32 %s11, 1
        %s245 = sand.u32 %s24, 1
        %s246 = sand.u32 %s24, 1
        %s247 = smul.addr %s246, 16
        %s248 = scalar_lea.vmem [#allocation2], %s247
        // Predicated region
        $region78: #{tpu_custom_call.1} parent=76 // pred_check
          %p249 = pneg %p37
        $region79: #{tpu_custom_call.1} parent=76 // pred_check_branch
          %251 = sbr.rel (%p249) target = $region81
        $region80: #{tpu_custom_call.1} parent=76 // pred_region
          _
        $region81: #{tpu_custom_call.1} parent=76 // pred_fallthru
          _
        %s252 = sand.u32 %s24, 1
        %s253 = sand.u32 %s24, 1
        %s254 = smul.addr %s253, 16
        %s255 = scalar_lea.vmem [#allocation2], %s254
        %p256 = pneg %p37
        %p257 = pneg %p34
        %p258 = pneg %p58
        %p259 = pneg %p55
        %p260 = pneg %p79
        %p261 = pneg %p76
        %p262 = pneg %p100
        %p263 = pneg %p97
        %p264 = pneg %p121
        %p265 = pneg %p118
        %p266 = pneg %p147
        %p267 = pneg %p144
        %s268 = sand.u32 %s134, 1
        %s269 = sand.u32 %s134, 1
        %s270 = smul.addr %s269, 128
        %s271 = scalar_lea.vmem [#allocation3], %s270
        %s272 = smul.u32 4, %s16
        %s273 = smul.u32 4, %s16
        %v274 = vld [vmem:[%s248] sm:$0xf]
        %v275 = vld [vmem:[%s248 + $0x4] sm:$0xf]
        %v276 = vld [vmem:[%s248 + $0x8] sm:$0xf]
        %v277 = vld [vmem:[%s248 + $0xc] sm:$0xf]
        %v282 = vlaneseq
        %v283 = vshrl.u32 %v282, 7
        %v284 = vsub.s32 0, %v283
        %v285 = vrot.slane %v274, %v284
        %v286 = vlaneseq
        %v287 = vshrl.u32 %v286, 7
        %v288 = vsub.s32 1, %v287
        %v289 = vrot.slane %v274, %v288
        %v290 = vlaneseq
        %v291 = vshrl.u32 %v290, 7
        %v292 = vsub.s32 2, %v291
        %v293 = vrot.slane %v274, %v292
        %v294 = vlaneseq
        %v295 = vshrl.u32 %v294, 7
        %v296 = vsub.s32 3, %v295
        %v297 = vrot.slane %v274, %v296
        %v298 = vlaneseq
        %v299 = vshrl.u32 %v298, 7
        %v300 = vsub.s32 0, %v299
        %v301 = vrot.slane %v275, %v300
        %v302 = vlaneseq
        %v303 = vshrl.u32 %v302, 7
        %v304 = vsub.s32 1, %v303
        %v305 = vrot.slane %v275, %v304
        %v306 = vlaneseq
        %v307 = vshrl.u32 %v306, 7
        %v308 = vsub.s32 2, %v307
        %v309 = vrot.slane %v275, %v308
        %v310 = vlaneseq
        %v311 = vshrl.u32 %v310, 7
        %v312 = vsub.s32 3, %v311
        %v313 = vrot.slane %v275, %v312
        %v314 = vlaneseq
        %v315 = vshrl.u32 %v314, 7
        %v316 = vsub.s32 0, %v315
        %v317 = vrot.slane %v276, %v316
        %v318 = vlaneseq
        %v319 = vshrl.u32 %v318, 7
        %v320 = vsub.s32 1, %v319
        %v321 = vrot.slane %v276, %v320
        %v322 = vlaneseq
        %v323 = vshrl.u32 %v322, 7
        %v324 = vsub.s32 2, %v323
        %v325 = vrot.slane %v276, %v324
        %v326 = vlaneseq
        %v327 = vshrl.u32 %v326, 7
        %v328 = vsub.s32 3, %v327
        %v329 = vrot.slane %v276, %v328
        %v330 = vlaneseq
        %v331 = vshrl.u32 %v330, 7
        %v332 = vsub.s32 0, %v331
        %v333 = vrot.slane %v277, %v332
        %v334 = vlaneseq
        %v335 = vshrl.u32 %v334, 7
        %v336 = vsub.s32 1, %v335
        %v337 = vrot.slane %v277, %v336
        %v338 = vlaneseq
        %v339 = vshrl.u32 %v338, 7
        %v340 = vsub.s32 2, %v339
        %v341 = vrot.slane %v277, %v340
        %v342 = vlaneseq
        %v343 = vshrl.u32 %v342, 7
        %v344 = vsub.s32 3, %v343
        %v345 = vrot.slane %v277, %v344
        %v362 = vld [vmem:[%s1] sm:$0x1f]
        %v363 = vld [vmem:[%s1 + $0x8] sm:$0x1f]
        %v364 = vld [vmem:[%s1 + $0x10] sm:$0x1f]
        %v365 = vld [vmem:[%s1 + $0x18] sm:$0x1f]
        %367 = vset.pattern.permute.xlu0 0
        %368 = vperm.xlu0 %367, %v362
        %v369 = vpop.permute.xlu0 %368
        %372 = vset.pattern.permute.xlu0 0
        %373 = vperm.xlu0 %372, %v363
        %v374 = vpop.permute.xlu0 %373
        %377 = vset.pattern.permute.xlu0 0
        %378 = vperm.xlu0 %377, %v364
        %v379 = vpop.permute.xlu0 %378
        %382 = vset.pattern.permute.xlu0 0
        %383 = vperm.xlu0 %382, %v365
        %v384 = vpop.permute.xlu0 %383
        %v386 = vsub.f32 %v285, %v369
        %v387 = vsub.f32 %v289, %v369
        %v388 = vsub.f32 %v293, %v369
        %v389 = vsub.f32 %v297, %v369
        %v390 = vsub.f32 %v301, %v374
        %v391 = vsub.f32 %v305, %v374
        %v392 = vsub.f32 %v309, %v374
        %v393 = vsub.f32 %v313, %v374
        %v394 = vsub.f32 %v317, %v379
        %v395 = vsub.f32 %v321, %v379
        %v396 = vsub.f32 %v325, %v379
        %v397 = vsub.f32 %v329, %v379
        %v398 = vsub.f32 %v333, %v384
        %v399 = vsub.f32 %v337, %v384
        %v400 = vsub.f32 %v341, %v384
        %v401 = vsub.f32 %v345, %v384
        %v402 = vld [vmem:[%s2] sm:$0x1f]
        %v403 = vld [vmem:[%s2 + $0x8] sm:$0x1f]
        %v404 = vld [vmem:[%s2 + $0x10] sm:$0x1f]
        %v405 = vld [vmem:[%s2 + $0x18] sm:$0x1f]
        %407 = vset.pattern.permute.xlu0 0
        %408 = vperm.xlu0 %407, %v402
        %v409 = vpop.permute.xlu0 %408
        %412 = vset.pattern.permute.xlu0 0
        %413 = vperm.xlu0 %412, %v403
        %v414 = vpop.permute.xlu0 %413
        %417 = vset.pattern.permute.xlu0 0
        %418 = vperm.xlu0 %417, %v404
        %v419 = vpop.permute.xlu0 %418
        %422 = vset.pattern.permute.xlu0 0
        %423 = vperm.xlu0 %422, %v405
        %v424 = vpop.permute.xlu0 %423
        %v426 = vmul.f32 %v386, %v409
        %v427 = vmul.f32 %v387, %v409
        %v428 = vmul.f32 %v388, %v409
        %v429 = vmul.f32 %v389, %v409
        %v430 = vmul.f32 %v390, %v414
        %v431 = vmul.f32 %v391, %v414
        %v432 = vmul.f32 %v392, %v414
        %v433 = vmul.f32 %v393, %v414
        %v434 = vmul.f32 %v394, %v419
        %v435 = vmul.f32 %v395, %v419
        %v436 = vmul.f32 %v396, %v419
        %v437 = vmul.f32 %v397, %v419
        %v438 = vmul.f32 %v398, %v424
        %v439 = vmul.f32 %v399, %v424
        %v440 = vmul.f32 %v400, %v424
        %v441 = vmul.f32 %v401, %v424
        %v442 = vld [vmem:[%s3] sm:$0x1f]
        %v443 = vld [vmem:[%s3 + $0x8] sm:$0x1f]
        %v444 = vld [vmem:[%s3 + $0x10] sm:$0x1f]
        %v445 = vld [vmem:[%s3 + $0x18] sm:$0x1f]
        %447 = vset.pattern.permute.xlu0 0
        %448 = vperm.xlu0 %447, %v442
        %v449 = vpop.permute.xlu0 %448
        %452 = vset.pattern.permute.xlu0 0
        %453 = vperm.xlu0 %452, %v443
        %v454 = vpop.permute.xlu0 %453
        %457 = vset.pattern.permute.xlu0 0
        %458 = vperm.xlu0 %457, %v444
        %v459 = vpop.permute.xlu0 %458
        %462 = vset.pattern.permute.xlu0 0
        %463 = vperm.xlu0 %462, %v445
        %v464 = vpop.permute.xlu0 %463
        %v466 = vsub.f32 %v449, %v285
        %v467 = vsub.f32 %v449, %v289
        %v468 = vsub.f32 %v449, %v293
        %v469 = vsub.f32 %v449, %v297
        %v470 = vsub.f32 %v454, %v301
        %v471 = vsub.f32 %v454, %v305
        %v472 = vsub.f32 %v454, %v309
        %v473 = vsub.f32 %v454, %v313
        %v474 = vsub.f32 %v459, %v317
        %v475 = vsub.f32 %v459, %v321
        %v476 = vsub.f32 %v459, %v325
        %v477 = vsub.f32 %v459, %v329
        %v478 = vsub.f32 %v464, %v333
        %v479 = vsub.f32 %v464, %v337
        %v480 = vsub.f32 %v464, %v341
        %v481 = vsub.f32 %v464, %v345
        %v482 = vld [vmem:[%s4] sm:$0x1f]
        %v483 = vld [vmem:[%s4 + $0x8] sm:$0x1f]
        %v484 = vld [vmem:[%s4 + $0x10] sm:$0x1f]
        %v485 = vld [vmem:[%s4 + $0x18] sm:$0x1f]
        %487 = vset.pattern.permute.xlu0 0
        %488 = vperm.xlu0 %487, %v482
        %v489 = vpop.permute.xlu0 %488
        %492 = vset.pattern.permute.xlu0 0
        %493 = vperm.xlu0 %492, %v483
        %v494 = vpop.permute.xlu0 %493
        %497 = vset.pattern.permute.xlu0 0
        %498 = vperm.xlu0 %497, %v484
        %v499 = vpop.permute.xlu0 %498
        %502 = vset.pattern.permute.xlu0 0
        %503 = vperm.xlu0 %502, %v485
        %v504 = vpop.permute.xlu0 %503
        %v506 = vmul.f32 %v466, %v489
        %v507 = vmul.f32 %v467, %v489
        %v508 = vmul.f32 %v468, %v489
        %v509 = vmul.f32 %v469, %v489
        %v510 = vmul.f32 %v470, %v494
        %v511 = vmul.f32 %v471, %v494
        %v512 = vmul.f32 %v472, %v494
        %v513 = vmul.f32 %v473, %v494
        %v514 = vmul.f32 %v474, %v499
        %v515 = vmul.f32 %v475, %v499
        %v516 = vmul.f32 %v476, %v499
        %v517 = vmul.f32 %v477, %v499
        %v518 = vmul.f32 %v478, %v504
        %v519 = vmul.f32 %v479, %v504
        %v520 = vmul.f32 %v480, %v504
        %v521 = vmul.f32 %v481, %v504
        %v522 = vmin.f32 %v426, %v506
        %v523 = vmin.f32 %v427, %v507
        %v524 = vmin.f32 %v428, %v508
        %v525 = vmin.f32 %v429, %v509
        %v526 = vmin.f32 %v430, %v510
        %v527 = vmin.f32 %v431, %v511
        %v528 = vmin.f32 %v432, %v512
        %v529 = vmin.f32 %v433, %v513
        %v530 = vmin.f32 %v434, %v514
        %v531 = vmin.f32 %v435, %v515
        %v532 = vmin.f32 %v436, %v516
        %v533 = vmin.f32 %v437, %v517
        %v534 = vmin.f32 %v438, %v518
        %v535 = vmin.f32 %v439, %v519
        %v536 = vmin.f32 %v440, %v520
        %v537 = vmin.f32 %v441, %v521
        %v538 = vmax.f32 %v522, 0.0
        %v539 = vmax.f32 %v523, 0.0
        %v540 = vmax.f32 %v524, 0.0
        %v541 = vmax.f32 %v525, 0.0
        %v542 = vmax.f32 %v526, 0.0
        %v543 = vmax.f32 %v527, 0.0
        %v544 = vmax.f32 %v528, 0.0
        %v545 = vmax.f32 %v529, 0.0
        %v546 = vmax.f32 %v530, 0.0
        %v547 = vmax.f32 %v531, 0.0
        %v548 = vmax.f32 %v532, 0.0
        %v549 = vmax.f32 %v533, 0.0
        %v550 = vmax.f32 %v534, 0.0
        %v551 = vmax.f32 %v535, 0.0
        %v552 = vmax.f32 %v536, 0.0
        %v553 = vmax.f32 %v537, 0.0
        %554 = vst [vmem:[%s271] sm:$0x1f] %v538
        %555 = vst [vmem:[%s271 + $0x8] sm:$0x1f] %v539
        %556 = vst [vmem:[%s271 + $0x10] sm:$0x1f] %v540
        %557 = vst [vmem:[%s271 + $0x18] sm:$0x1f] %v541
        %558 = vst [vmem:[%s271 + $0x20] sm:$0x1f] %v542
        %559 = vst [vmem:[%s271 + $0x28] sm:$0x1f] %v543
        %560 = vst [vmem:[%s271 + $0x30] sm:$0x1f] %v544
        %561 = vst [vmem:[%s271 + $0x38] sm:$0x1f] %v545
        %562 = vst [vmem:[%s271 + $0x40] sm:$0x1f] %v546
        %563 = vst [vmem:[%s271 + $0x48] sm:$0x1f] %v547
        %564 = vst [vmem:[%s271 + $0x50] sm:$0x1f] %v548
        %565 = vst [vmem:[%s271 + $0x58] sm:$0x1f] %v549
        %566 = vst [vmem:[%s271 + $0x60] sm:$0x1f] %v550
        %567 = vst [vmem:[%s271 + $0x68] sm:$0x1f] %v551
        %568 = vst [vmem:[%s271 + $0x70] sm:$0x1f] %v552
        %569 = vst [vmem:[%s271 + $0x78] sm:$0x1f] %v553
        %s570 = sand.u32 %s134, 1
        %s571 = sand.u32 %s134, 1
        %s572 = smul.addr %s571, 128
        %s573 = scalar_lea.vmem [#allocation3], %s572
        // Predicated region
        $region82: #{tpu_custom_call.1} parent=76 // pred_check
          %p574 = pneg %p144
        $region83: #{tpu_custom_call.1} parent=76 // pred_check_branch
          %576 = sbr.rel (%p574) target = $region85
        $region84: #{tpu_custom_call.1} parent=76 // pred_region
          %s577 = smul.u32 4, %s16
          %s578 = smul.addr %s577, 8
          %s579 = scalar_lea.vmem %s5, %s578
          // Predicated region
          $region86: #{tpu_custom_call.1} parent=84 // pred_check
            _
          $region87: #{tpu_custom_call.1} parent=84 // pred_check_branch
            %581 = sbr.rel (0) target = $region89
          $region88: #{tpu_custom_call.1} parent=84 // pred_region
            // Predicated region
            $region90: #{tpu_custom_call.1} parent=88 // pred_check
              _
            $region91: #{tpu_custom_call.1} parent=88 // pred_check_branch
              %583 = sbr.rel (0) target = $region93
            $region92: #{tpu_custom_call.1} parent=88 // pred_region
              loop: start=0, step=1, limit=1
              $region94: #{tpu_custom_call.1} parent=92 // loop_pre_header
                _
              $region95: #{tpu_custom_call.1} parent=92 // loop_header
                %s585 = sphi 0, %s589
                %p586 = scmp.ge.s32.totalorder %s585, 1
                %s590 = sphi %s573, %s573
                %s591 = sphi %s579, %s579
              $region96: #{tpu_custom_call.1} parent=92 // loop_header_branch
                %588 = sbr.rel (%p586) target = $region100
              $region97: #{tpu_custom_call.1} parent=92 // loop_body
                %v592 = vld [vmem:[%s590] sm:$0xff]
                %593 = vst [vmem:[%s591] sm:$0xff] %v592
                %v594 = vld [vmem:[%s590 + $0x8] sm:$0xff]
                %595 = vst [vmem:[%s591 + $0x8] sm:$0xff] %v594
                %v596 = vld [vmem:[%s590 + $0x10] sm:$0xff]
                %597 = vst [vmem:[%s591 + $0x10] sm:$0xff] %v596
                %v598 = vld [vmem:[%s590 + $0x18] sm:$0xff]
                %599 = vst [vmem:[%s591 + $0x18] sm:$0xff] %v598
                %v600 = vld [vmem:[%s590 + $0x20] sm:$0xff]
                %601 = vst [vmem:[%s591 + $0x40] sm:$0xff] %v600
                %v602 = vld [vmem:[%s590 + $0x28] sm:$0xff]
                %603 = vst [vmem:[%s591 + $0x48] sm:$0xff] %v602
                %v604 = vld [vmem:[%s590 + $0x30] sm:$0xff]
                %605 = vst [vmem:[%s591 + $0x50] sm:$0xff] %v604
                %v606 = vld [vmem:[%s590 + $0x38] sm:$0xff]
                %607 = vst [vmem:[%s591 + $0x58] sm:$0xff] %v606
                %v608 = vld [vmem:[%s590 + $0x40] sm:$0xff]
                %609 = vst [vmem:[%s591 + $0x80] sm:$0xff] %v608
                %v610 = vld [vmem:[%s590 + $0x48] sm:$0xff]
                %611 = vst [vmem:[%s591 + $0x88] sm:$0xff] %v610
                %v612 = vld [vmem:[%s590 + $0x50] sm:$0xff]
                %613 = vst [vmem:[%s591 + $0x90] sm:$0xff] %v612
                %v614 = vld [vmem:[%s590 + $0x58] sm:$0xff]
                %615 = vst [vmem:[%s591 + $0x98] sm:$0xff] %v614
                %v616 = vld [vmem:[%s590 + $0x60] sm:$0xff]
                %617 = vst [vmem:[%s591 + $0xc0] sm:$0xff] %v616
                %v618 = vld [vmem:[%s590 + $0x68] sm:$0xff]
                %619 = vst [vmem:[%s591 + $0xc8] sm:$0xff] %v618
                %v620 = vld [vmem:[%s590 + $0x70] sm:$0xff]
                %621 = vst [vmem:[%s591 + $0xd0] sm:$0xff] %v620
                %v622 = vld [vmem:[%s590 + $0x78] sm:$0xff]
                %623 = vst [vmem:[%s591 + $0xd8] sm:$0xff] %v622
              $region98: #{tpu_custom_call.1} parent=92 // loop_footer
                %s589 = sadd.s32 1, %s585
              $region99: #{tpu_custom_call.1} parent=92 // loop_footer_branch
                %584 = sbr.rel target = $region95
              $region100: #{tpu_custom_call.1} parent=92 // loop_exit
                _
            $region93: #{tpu_custom_call.1} parent=88 // pred_fallthru
              _
            // Predicated region
            $region101: #{tpu_custom_call.1} parent=88 // pred_check
              _
            $region102: #{tpu_custom_call.1} parent=88 // pred_check_branch
              %625 = sbr.rel target = $region104
            $region103: #{tpu_custom_call.1} parent=88 // pred_region
              _
            $region104: #{tpu_custom_call.1} parent=88 // pred_fallthru
              _
          $region89: #{tpu_custom_call.1} parent=84 // pred_fallthru
            _
          %626 = vnop
        $region85: #{tpu_custom_call.1} parent=76 // pred_fallthru
          _
      $region77: #{tpu_custom_call.1} parent=5 // pred_fallthru
        _
      %p627 = scmp.le.s32.totalorder 2, %s11
      // Predicated region
      $region105: #{tpu_custom_call.1} parent=5 // pred_check
        %p628 = pneg %p627
      $region106: #{tpu_custom_call.1} parent=5 // pred_check_branch
        %630 = sbr.rel (%p628) target = $region108
      $region107: #{tpu_custom_call.1} parent=5 // pred_region
        %s631 = ssub.s32 %s11, 2
        // Predicated region
        $region109: #{tpu_custom_call.1} parent=107 // pred_check
          %p632 = pneg %p150
        $region110: #{tpu_custom_call.1} parent=107 // pred_check_branch
          %634 = sbr.rel (%p632) target = $region112
        $region111: #{tpu_custom_call.1} parent=107 // pred_region
          %s635 = sand.u32 %s135, 1
          %s636 = sand.u32 %s135, 1
          %s637 = smul.addr %s636, 128
          %s638 = scalar_lea.vmem [#allocation3], %s637
        $region112: #{tpu_custom_call.1} parent=107 // pred_fallthru
          _
      $region108: #{tpu_custom_call.1} parent=5 // pred_fallthru
        _
    $region6: #{tpu_custom_call.1} parent=1 // loop_footer
      %s15 = sadd.s32 1, %s11
    $region7: #{tpu_custom_call.1} parent=1 // loop_footer_branch
      %10 = sbr.rel target = $region3
    $region8: #{tpu_custom_call.1} parent=1 // loop_exit
      _

</llo_original>
